<compile_context>
chip_gen: v7x
topology: tpu7x:2x2x1
jax: 0.10.0
libtpu: 0.0.40
codegen_flags: <defaults>
</compile_context>

<pallas_src>
import jax
import jax.numpy as jnp
from jax.experimental import pallas as pl
from jax.experimental.pallas import tpu as pltpu


# Packed-parameter layout (flat f32[26], lives in SMEM, read as scalars):
#   [ 0:12)  w1[j, k]  at 3*j + k       (Linear1 weight, torch shape (4, 3))
#   [12:16)  b1[j]     at 12 + j
#   [16:24)  w2[m, j]  at 16 + 4*m + j  (Linear2 weight, torch shape (2, 4))
#   [24:26)  b2[m]     at 24 + m
_NPARAMS = 26


def _fused_kernel(p_ref, x_ref, out_ref):
    """p_ref: SMEM (26,) f32.  x_ref: VMEM (3, TB).  out_ref: VMEM (2, 4, TB)."""
    x0 = x_ref[0, :]
    x1 = x_ref[1, :]
    x2 = x_ref[2, :]

    # Layer 1: v1[j, :] = sum_k w1[j, k] * x[k, :] + b1[j]   (VPU broadcast FMAs)
    v1 = []
    for j in range(4):
        v1j = (x0 * p_ref[3 * j + 0]
               + x1 * p_ref[3 * j + 1]
               + x2 * p_ref[3 * j + 2]
               + p_ref[12 + j])
        out_ref[0, j, :] = v1j
        v1.append(v1j)

    # Layer 2: v4[m, :] = sum_j w2[m, j] * v1[j, :] + b2[m]
    for m in range(2):
        v4m = (v1[0] * p_ref[16 + 4 * m + 0]
               + v1[1] * p_ref[16 + 4 * m + 1]
               + v1[2] * p_ref[16 + 4 * m + 2]
               + v1[3] * p_ref[16 + 4 * m + 3]
               + p_ref[24 + m])
        out_ref[1, m, :] = v4m

    # Zero-pad rows so slab 1 matches slab 0's feature width ("stack" emulation).
    zero = jnp.zeros_like(x0)
    out_ref[1, 2, :] = zero
    out_ref[1, 3, :] = zero


def _pick_tile(batch):
    # Single full-extent block for small/medium B (always layout-legal);
    # otherwise a multiple-of-128 lane tile sized for v7x's 64 MiB VMEM
    # (double-buffered x + out per tile ~ a few hundred KiB at TB=8192).
    max_tb = 8192
    return batch if batch <= max_tb else max_tb


def fused_forward(x, packed_params, *, lane_major=False):
    """x: (B, 3) f32.  packed_params: (26,) f32.

    Returns the stacked output:
      lane_major=False -> (2, B, 4)  (torch-style layout of the original module)
      lane_major=True  -> (2, 4, B)  (kernel-native, lane-dense)
    """
    B = x.shape[0]
    xT = jnp.transpose(x).astype(jnp.float32)          # (3, B): B on the lane axis
    tb = _pick_tile(B)
    grid = (pl.cdiv(B, tb),)

    out = pl.pallas_call(
        _fused_kernel,
        out_shape=jax.ShapeDtypeStruct((2, 4, B), jnp.float32),
        grid=grid,
        in_specs=[
            pl.BlockSpec(memory_space=pltpu.MemorySpace.SMEM),   # packed params
            pl.BlockSpec((3, tb), lambda i: (0, i)),             # xT tile
        ],
        out_specs=pl.BlockSpec((2, 4, tb), lambda i: (0, 0, i)),
        compiler_params=pltpu.CompilerParams(
            dimension_semantics=("parallel",)),
        cost_estimate=pl.CostEstimate(
            flops=40 * B,
            transcendentals=0,
            bytes_accessed=44 * B + 4 * _NPARAMS),
    )(packed_params, xT)

    if lane_major:
        return out
    return jnp.transpose(out, (0, 2, 1))                # (2, B, 4), outside kernel


def pack_params(w1, b1, w2, b2):
    """One-time packing (init-time, not per-call) into a flat (26,) f32 buffer."""
    return jnp.concatenate(
        [w1.reshape(-1), b1.reshape(-1), w2.reshape(-1), b2.reshape(-1)]
    ).astype(jnp.float32)


def init_params(key):
    # Deterministic init mimicking torch.nn.Linear (uniform +-1/sqrt(fan_in)).
    k1, k2, k3, k4 = jax.random.split(key, 4)
    lim1 = 1.0 / jnp.sqrt(3.0)
    lim2 = 1.0 / jnp.sqrt(4.0)
    w1 = jax.random.uniform(k1, (4, 3), jnp.float32, -lim1, lim1)
    b1 = jax.random.uniform(k2, (4,), jnp.float32, -lim1, lim1)
    w2 = jax.random.uniform(k3, (2, 4), jnp.float32, -lim2, lim2)
    b2 = jax.random.uniform(k4, (2,), jnp.float32, -lim2, lim2)
    return w1, b1, w2, b2


if __name__ == "__main__":
    key = jax.random.PRNGKey(0)
    kx, kp = jax.random.split(key)
    x = jax.random.normal(kx, (2, 3), jnp.float32)      # matches torch.randn(2, 3)
    w1, b1, w2, b2 = init_params(kp)
    packed = pack_params(w1, b1, w2, b2)                 # packed once at init time

    v3 = jax.block_until_ready(fused_forward(x, packed))

    # Reference check in plain JAX (torch conventions).
    v1_ref = x @ w1.T + b1
    v4_ref = v1_ref @ w2.T + b2
    assert v3.shape == (2, 2, 4)
    assert jnp.allclose(v3[0], v1_ref, atol=1e-5), "v1 mismatch"
    assert jnp.allclose(v3[1, :, :2], v4_ref, atol=1e-5), "v4 mismatch"
    assert jnp.allclose(v3[1, :, 2:], 0.0), "pad region not zero"

    print("KERNEL_OK")
</pallas_src>

<mosaic_0001>
module attributes {stable_mosaic.version = 11 : i64} {
  func.func @_fused_kernel(%arg0: i32, %arg1: memref<26xf32, #tpu.memory_space<smem>>, %arg2: memref<3x2xf32, #tpu.memory_space<vmem>>, %arg3: memref<2x4x2xf32, #tpu.memory_space<vmem>>) attributes {dimension_semantics = [#tpu.dimension_semantics<parallel>], iteration_bounds = array<i64: 1>, scalar_prefetch = 0 : i64, scratch_operands = 0 : i64, tpu.core_type = #tpu.core_type<tc>, window_params = [{transform_indices = @transform_0, window_bounds = array<i64: 26>}, {transform_indices = @transform_1, window_bounds = array<i64: 3, 2>}, {transform_indices = @transform_2, window_bounds = array<i64: 2, 4, 2>}]} {
    %c0 = arith.constant 0 : index
    %c0_0 = arith.constant 0 : index
    %0 = vector.load %arg2[%c0, %c0_0] : memref<3x2xf32, #tpu.memory_space<vmem>>, vector<1x2xf32>
    %1 = vector.shape_cast %0 : vector<1x2xf32> to vector<2xf32>
    %c1 = arith.constant 1 : index
    %c0_1 = arith.constant 0 : index
    %2 = vector.load %arg2[%c1, %c0_1] : memref<3x2xf32, #tpu.memory_space<vmem>>, vector<1x2xf32>
    %3 = vector.shape_cast %2 : vector<1x2xf32> to vector<2xf32>
    %c2 = arith.constant 2 : index
    %c0_2 = arith.constant 0 : index
    %4 = vector.load %arg2[%c2, %c0_2] : memref<3x2xf32, #tpu.memory_space<vmem>>, vector<1x2xf32>
    %5 = vector.shape_cast %4 : vector<1x2xf32> to vector<2xf32>
    %c0_3 = arith.constant 0 : index
    %6 = memref.load %arg1[%c0_3] : memref<26xf32, #tpu.memory_space<smem>>
    %7 = vector.broadcast %6 : f32 to vector<2xf32>
    %8 = arith.mulf %1, %7 : vector<2xf32>
    %c1_4 = arith.constant 1 : index
    %9 = memref.load %arg1[%c1_4] : memref<26xf32, #tpu.memory_space<smem>>
    %10 = vector.broadcast %9 : f32 to vector<2xf32>
    %11 = arith.mulf %3, %10 : vector<2xf32>
    %12 = arith.addf %8, %11 : vector<2xf32>
    %c2_5 = arith.constant 2 : index
    %13 = memref.load %arg1[%c2_5] : memref<26xf32, #tpu.memory_space<smem>>
    %14 = vector.broadcast %13 : f32 to vector<2xf32>
    %15 = arith.mulf %5, %14 : vector<2xf32>
    %16 = arith.addf %12, %15 : vector<2xf32>
    %c12 = arith.constant 12 : index
    %17 = memref.load %arg1[%c12] : memref<26xf32, #tpu.memory_space<smem>>
    %18 = vector.broadcast %17 : f32 to vector<2xf32>
    %19 = arith.addf %16, %18 : vector<2xf32>
    %c0_6 = arith.constant 0 : index
    %c0_7 = arith.constant 0 : index
    %c0_8 = arith.constant 0 : index
    %20 = vector.load %arg3[%c0_6, %c0_7, %c0_8] : memref<2x4x2xf32, #tpu.memory_space<vmem>>, vector<1x1x2xf32>
    %21 = vector.shape_cast %20 : vector<1x1x2xf32> to vector<2xf32>
    %22 = vector.shape_cast %19 : vector<2xf32> to vector<1x1x2xf32>
    tpu.vector_store %arg3[%c0_6, %c0_7, %c0_8], %22 {strides = array<i32>} : memref<2x4x2xf32, #tpu.memory_space<vmem>>, vector<1x1x2xf32>,
    %c3 = arith.constant 3 : index
    %23 = memref.load %arg1[%c3] : memref<26xf32, #tpu.memory_space<smem>>
    %24 = vector.broadcast %23 : f32 to vector<2xf32>
    %25 = arith.mulf %1, %24 : vector<2xf32>
    %c4 = arith.constant 4 : index
    %26 = memref.load %arg1[%c4] : memref<26xf32, #tpu.memory_space<smem>>
    %27 = vector.broadcast %26 : f32 to vector<2xf32>
    %28 = arith.mulf %3, %27 : vector<2xf32>
    %29 = arith.addf %25, %28 : vector<2xf32>
    %c5 = arith.constant 5 : index
    %30 = memref.load %arg1[%c5] : memref<26xf32, #tpu.memory_space<smem>>
    %31 = vector.broadcast %30 : f32 to vector<2xf32>
    %32 = arith.mulf %5, %31 : vector<2xf32>
    %33 = arith.addf %29, %32 : vector<2xf32>
    %c13 = arith.constant 13 : index
    %34 = memref.load %arg1[%c13] : memref<26xf32, #tpu.memory_space<smem>>
    %35 = vector.broadcast %34 : f32 to vector<2xf32>
    %36 = arith.addf %33, %35 : vector<2xf32>
    %c0_9 = arith.constant 0 : index
    %c1_10 = arith.constant 1 : index
    %c0_11 = arith.constant 0 : index
    %37 = vector.load %arg3[%c0_9, %c1_10, %c0_11] : memref<2x4x2xf32, #tpu.memory_space<vmem>>, vector<1x1x2xf32>
    %38 = vector.shape_cast %37 : vector<1x1x2xf32> to vector<2xf32>
    %39 = vector.shape_cast %36 : vector<2xf32> to vector<1x1x2xf32>
    tpu.vector_store %arg3[%c0_9, %c1_10, %c0_11], %39 {strides = array<i32>} : memref<2x4x2xf32, #tpu.memory_space<vmem>>, vector<1x1x2xf32>,
    %c6 = arith.constant 6 : index
    %40 = memref.load %arg1[%c6] : memref<26xf32, #tpu.memory_space<smem>>
    %41 = vector.broadcast %40 : f32 to vector<2xf32>
    %42 = arith.mulf %1, %41 : vector<2xf32>
    %c7 = arith.constant 7 : index
    %43 = memref.load %arg1[%c7] : memref<26xf32, #tpu.memory_space<smem>>
    %44 = vector.broadcast %43 : f32 to vector<2xf32>
    %45 = arith.mulf %3, %44 : vector<2xf32>
    %46 = arith.addf %42, %45 : vector<2xf32>
    %c8 = arith.constant 8 : index
    %47 = memref.load %arg1[%c8] : memref<26xf32, #tpu.memory_space<smem>>
    %48 = vector.broadcast %47 : f32 to vector<2xf32>
    %49 = arith.mulf %5, %48 : vector<2xf32>
    %50 = arith.addf %46, %49 : vector<2xf32>
    %c14 = arith.constant 14 : index
    %51 = memref.load %arg1[%c14] : memref<26xf32, #tpu.memory_space<smem>>
    %52 = vector.broadcast %51 : f32 to vector<2xf32>
    %53 = arith.addf %50, %52 : vector<2xf32>
    %c0_12 = arith.constant 0 : index
    %c2_13 = arith.constant 2 : index
    %c0_14 = arith.constant 0 : index
    %54 = vector.load %arg3[%c0_12, %c2_13, %c0_14] : memref<2x4x2xf32, #tpu.memory_space<vmem>>, vector<1x1x2xf32>
    %55 = vector.shape_cast %54 : vector<1x1x2xf32> to vector<2xf32>
    %56 = vector.shape_cast %53 : vector<2xf32> to vector<1x1x2xf32>
    tpu.vector_store %arg3[%c0_12, %c2_13, %c0_14], %56 {strides = array<i32>} : memref<2x4x2xf32, #tpu.memory_space<vmem>>, vector<1x1x2xf32>,
    %c9 = arith.constant 9 : index
    %57 = memref.load %arg1[%c9] : memref<26xf32, #tpu.memory_space<smem>>
    %58 = vector.broadcast %57 : f32 to vector<2xf32>
    %59 = arith.mulf %1, %58 : vector<2xf32>
    %c10 = arith.constant 10 : index
    %60 = memref.load %arg1[%c10] : memref<26xf32, #tpu.memory_space<smem>>
    %61 = vector.broadcast %60 : f32 to vector<2xf32>
    %62 = arith.mulf %3, %61 : vector<2xf32>
    %63 = arith.addf %59, %62 : vector<2xf32>
    %c11 = arith.constant 11 : index
    %64 = memref.load %arg1[%c11] : memref<26xf32, #tpu.memory_space<smem>>
    %65 = vector.broadcast %64 : f32 to vector<2xf32>
    %66 = arith.mulf %5, %65 : vector<2xf32>
    %67 = arith.addf %63, %66 : vector<2xf32>
    %c15 = arith.constant 15 : index
    %68 = memref.load %arg1[%c15] : memref<26xf32, #tpu.memory_space<smem>>
    %69 = vector.broadcast %68 : f32 to vector<2xf32>
    %70 = arith.addf %67, %69 : vector<2xf32>
    %c0_15 = arith.constant 0 : index
    %c3_16 = arith.constant 3 : index
    %c0_17 = arith.constant 0 : index
    %71 = vector.load %arg3[%c0_15, %c3_16, %c0_17] : memref<2x4x2xf32, #tpu.memory_space<vmem>>, vector<1x1x2xf32>
    %72 = vector.shape_cast %71 : vector<1x1x2xf32> to vector<2xf32>
    %73 = vector.shape_cast %70 : vector<2xf32> to vector<1x1x2xf32>
    tpu.vector_store %arg3[%c0_15, %c3_16, %c0_17], %73 {strides = array<i32>} : memref<2x4x2xf32, #tpu.memory_space<vmem>>, vector<1x1x2xf32>,
    %c16 = arith.constant 16 : index
    %74 = memref.load %arg1[%c16] : memref<26xf32, #tpu.memory_space<smem>>
    %75 = vector.broadcast %74 : f32 to vector<2xf32>
    %76 = arith.mulf %19, %75 : vector<2xf32>
    %c17 = arith.constant 17 : index
    %77 = memref.load %arg1[%c17] : memref<26xf32, #tpu.memory_space<smem>>
    %78 = vector.broadcast %77 : f32 to vector<2xf32>
    %79 = arith.mulf %36, %78 : vector<2xf32>
    %80 = arith.addf %76, %79 : vector<2xf32>
    %c18 = arith.constant 18 : index
    %81 = memref.load %arg1[%c18] : memref<26xf32, #tpu.memory_space<smem>>
    %82 = vector.broadcast %81 : f32 to vector<2xf32>
    %83 = arith.mulf %53, %82 : vector<2xf32>
    %84 = arith.addf %80, %83 : vector<2xf32>
    %c19 = arith.constant 19 : index
    %85 = memref.load %arg1[%c19] : memref<26xf32, #tpu.memory_space<smem>>
    %86 = vector.broadcast %85 : f32 to vector<2xf32>
    %87 = arith.mulf %70, %86 : vector<2xf32>
    %88 = arith.addf %84, %87 : vector<2xf32>
    %c24 = arith.constant 24 : index
    %89 = memref.load %arg1[%c24] : memref<26xf32, #tpu.memory_space<smem>>
    %90 = vector.broadcast %89 : f32 to vector<2xf32>
    %91 = arith.addf %88, %90 : vector<2xf32>
    %c1_18 = arith.constant 1 : index
    %c0_19 = arith.constant 0 : index
    %c0_20 = arith.constant 0 : index
    %92 = vector.load %arg3[%c1_18, %c0_19, %c0_20] : memref<2x4x2xf32, #tpu.memory_space<vmem>>, vector<1x1x2xf32>
    %93 = vector.shape_cast %92 : vector<1x1x2xf32> to vector<2xf32>
    %94 = vector.shape_cast %91 : vector<2xf32> to vector<1x1x2xf32>
    tpu.vector_store %arg3[%c1_18, %c0_19, %c0_20], %94 {strides = array<i32>} : memref<2x4x2xf32, #tpu.memory_space<vmem>>, vector<1x1x2xf32>,
    %c20 = arith.constant 20 : index
    %95 = memref.load %arg1[%c20] : memref<26xf32, #tpu.memory_space<smem>>
    %96 = vector.broadcast %95 : f32 to vector<2xf32>
    %97 = arith.mulf %19, %96 : vector<2xf32>
    %c21 = arith.constant 21 : index
    %98 = memref.load %arg1[%c21] : memref<26xf32, #tpu.memory_space<smem>>
    %99 = vector.broadcast %98 : f32 to vector<2xf32>
    %100 = arith.mulf %36, %99 : vector<2xf32>
    %101 = arith.addf %97, %100 : vector<2xf32>
    %c22 = arith.constant 22 : index
    %102 = memref.load %arg1[%c22] : memref<26xf32, #tpu.memory_space<smem>>
    %103 = vector.broadcast %102 : f32 to vector<2xf32>
    %104 = arith.mulf %53, %103 : vector<2xf32>
    %105 = arith.addf %101, %104 : vector<2xf32>
    %c23 = arith.constant 23 : index
    %106 = memref.load %arg1[%c23] : memref<26xf32, #tpu.memory_space<smem>>
    %107 = vector.broadcast %106 : f32 to vector<2xf32>
    %108 = arith.mulf %70, %107 : vector<2xf32>
    %109 = arith.addf %105, %108 : vector<2xf32>
    %c25 = arith.constant 25 : index
    %110 = memref.load %arg1[%c25] : memref<26xf32, #tpu.memory_space<smem>>
    %111 = vector.broadcast %110 : f32 to vector<2xf32>
    %112 = arith.addf %109, %111 : vector<2xf32>
    %c1_21 = arith.constant 1 : index
    %c1_22 = arith.constant 1 : index
    %c0_23 = arith.constant 0 : index
    %113 = vector.load %arg3[%c1_21, %c1_22, %c0_23] : memref<2x4x2xf32, #tpu.memory_space<vmem>>, vector<1x1x2xf32>
    %114 = vector.shape_cast %113 : vector<1x1x2xf32> to vector<2xf32>
    %115 = vector.shape_cast %112 : vector<2xf32> to vector<1x1x2xf32>
    tpu.vector_store %arg3[%c1_21, %c1_22, %c0_23], %115 {strides = array<i32>} : memref<2x4x2xf32, #tpu.memory_space<vmem>>, vector<1x1x2xf32>,
    %cst = arith.constant 0.000000e+00 : f32
    %116 = vector.broadcast %cst : f32 to vector<2xf32>
    %c1_24 = arith.constant 1 : index
    %c2_25 = arith.constant 2 : index
    %c0_26 = arith.constant 0 : index
    %117 = vector.load %arg3[%c1_24, %c2_25, %c0_26] : memref<2x4x2xf32, #tpu.memory_space<vmem>>, vector<1x1x2xf32>
    %118 = vector.shape_cast %117 : vector<1x1x2xf32> to vector<2xf32>
    %119 = vector.shape_cast %116 : vector<2xf32> to vector<1x1x2xf32>
    tpu.vector_store %arg3[%c1_24, %c2_25, %c0_26], %119 {strides = array<i32>} : memref<2x4x2xf32, #tpu.memory_space<vmem>>, vector<1x1x2xf32>,
    %c1_27 = arith.constant 1 : index
    %c3_28 = arith.constant 3 : index
    %c0_29 = arith.constant 0 : index
    %120 = vector.load %arg3[%c1_27, %c3_28, %c0_29] : memref<2x4x2xf32, #tpu.memory_space<vmem>>, vector<1x1x2xf32>
    %121 = vector.shape_cast %120 : vector<1x1x2xf32> to vector<2xf32>
    %122 = vector.shape_cast %116 : vector<2xf32> to vector<1x1x2xf32>
    tpu.vector_store %arg3[%c1_27, %c3_28, %c0_29], %122 {strides = array<i32>} : memref<2x4x2xf32, #tpu.memory_space<vmem>>, vector<1x1x2xf32>,
    return
  }
  func.func @transform_0(%arg0: i32) -> i32 {
    %c0_i32 = arith.constant 0 : i32
    %c0_i32_0 = arith.constant 0 : i32
    return %c0_i32 : i32
  }
  func.func @transform_1(%arg0: i32) -> (i32, i32) {
    %c0_i32 = arith.constant 0 : i32
    %c0_i32_0 = arith.constant 0 : i32
    return %c0_i32, %arg0 : i32, i32
  }
  func.func @transform_2(%arg0: i32) -> (i32, i32, i32) {
    %c0_i32 = arith.constant 0 : i32
    %c0_i32_0 = arith.constant 0 : i32
    %c0_i32_1 = arith.constant 0 : i32
    return %c0_i32, %c0_i32_0, %arg0 : i32, i32, i32
  }
}

</mosaic_0001>

<llo_original>
// kernel: tpu_custom_call.1
$region0: #{tpu_custom_call.1}
  #allocation0 [shape = 'u32[]', space=smem, size = 0x4, offset = 0x4, fixed_abs, tag = 'smem constant byte address 0x4 - core index']
  #allocation1 [shape = 'u32[144,128]{1,0:T(1,128)}', space=vmem, size = 0x12000, scoped, tag = 'internal scratch']
  %s0 = inlined_call_operand.vmem [shape: f32[26], index: 0, kind: input, shape index: {}]
  %s1 = inlined_call_operand.vmem [shape: f32[3,2], index: 1, kind: input, shape index: {}]
  %s2 = inlined_call_operand.vmem [shape: f32[2,4,2], index: 2, kind: output, shape index: {}]
  %s3 = sld [smem:[#allocation0]]
  $region22: #{tpu_custom_call.1} parent=0
    _
  %s5 = ssub.s32 1, %s3
  %s6 = scalar_select 0, %s5, %s3
  $region1: #{tpu_custom_call.1} parent=0
    #allocation2 [shape = 'u8[512]{0}', space=smem, size = 0x200, scoped, tag = 'input window, operand 0, single buffered']
    #allocation3 [shape = 's32[1]{0}', space=sflag, size = 0x4, scoped, tag = 'scoped memory for tpu_custom_call.1']
    %7 = vsyncpa [#allocation3], 0
    // Predicated region
    $region2: #{tpu_custom_call.1} parent=1 // pred_check
      _
    $region3: #{tpu_custom_call.1} parent=1 // pred_check_branch
      %9 = sbr.rel (0) target = $region5
    $region4: #{tpu_custom_call.1} parent=1 // pred_region
      %s11 = ssub.s32 16, 16
      %12 = vsyncadd [#allocation3], %s11
      %s14 = sshll.u32 %s0, 4
      %s15 = int_to_ptr.vmem [resolvable:$true] %s14
      %17 = dma.vmem_to_smem %s15, 16, [#allocation2], [#allocation3]
    $region5: #{tpu_custom_call.1} parent=1 // pred_fallthru
      _
    // Predicated region
    $region6: #{tpu_custom_call.1} parent=1 // pred_check
      _
    $region7: #{tpu_custom_call.1} parent=1 // pred_check_branch
      %19 = sbr.rel (0) target = $region9
    $region8: #{tpu_custom_call.1} parent=1 // pred_region
      _
    $region9: #{tpu_custom_call.1} parent=1 // pred_fallthru
      _
    // Predicated region
    $region10: #{tpu_custom_call.1} parent=1 // pred_check
      _
    $region11: #{tpu_custom_call.1} parent=1 // pred_check_branch
      %21 = sbr.rel (0) target = $region13
    $region12: #{tpu_custom_call.1} parent=1 // pred_region
      %22 = dma.done [#allocation3], 16
    $region13: #{tpu_custom_call.1} parent=1 // pred_fallthru
      _
    %23 = sfence
    %v24 = vld [vmem:[%s1] sm:$0x1]
    %v25 = vld [vmem:[%s1 + $0x1] sm:$0x1]
    %v26 = vld [vmem:[%s1 + $0x2] sm:$0x1]
    %s27 = sld [smem:[#allocation2]]
    %v28 = vstv %s27
    %v29 = vmul.f32 %v24, %v28
    %s30 = sld [smem:[#allocation2 + $0x1]]
    %v31 = vstv %s30
    %v32 = vmul.f32 %v25, %v31
    %v33 = vadd.f32 %v29, %v32
    %s34 = sld [smem:[#allocation2 + $0x2]]
    %v35 = vstv %s34
    %v36 = vmul.f32 %v26, %v35
    %v37 = vadd.f32 %v33, %v36
    %s38 = sld [smem:[#allocation2 + $0xc]]
    %v39 = vstv %s38
    %v40 = vadd.f32 %v37, %v39
    %vm41 = vcmask 8192
    %42 = vst.msk [vmem:[%s2] sm:$0x1] %vm41, %v40
    %s43 = sld [smem:[#allocation2 + $0x3]]
    %v44 = vstv %s43
    %v45 = vmul.f32 %v24, %v44
    %s46 = sld [smem:[#allocation2 + $0x4]]
    %v47 = vstv %s46
    %v48 = vmul.f32 %v25, %v47
    %v49 = vadd.f32 %v45, %v48
    %s50 = sld [smem:[#allocation2 + $0x5]]
    %v51 = vstv %s50
    %v52 = vmul.f32 %v26, %v51
    %v53 = vadd.f32 %v49, %v52
    %s54 = sld [smem:[#allocation2 + $0xd]]
    %v55 = vstv %s54
    %v56 = vadd.f32 %v53, %v55
    %57 = vst.msk [vmem:[%s2 + $0x1] sm:$0x1] %vm41, %v56
    %s58 = sld [smem:[#allocation2 + $0x6]]
    %v59 = vstv %s58
    %v60 = vmul.f32 %v24, %v59
    %s61 = sld [smem:[#allocation2 + $0x7]]
    %v62 = vstv %s61
    %v63 = vmul.f32 %v25, %v62
    %v64 = vadd.f32 %v60, %v63
    %s65 = sld [smem:[#allocation2 + $0x8]]
    %v66 = vstv %s65
    %v67 = vmul.f32 %v26, %v66
    %v68 = vadd.f32 %v64, %v67
    %s69 = sld [smem:[#allocation2 + $0xe]]
    %v70 = vstv %s69
    %v71 = vadd.f32 %v68, %v70
    %72 = vst.msk [vmem:[%s2 + $0x2] sm:$0x1] %vm41, %v71
    %s73 = sld [smem:[#allocation2 + $0x9]]
    %v74 = vstv %s73
    %v75 = vmul.f32 %v24, %v74
    %s76 = sld [smem:[#allocation2 + $0xa]]
    %v77 = vstv %s76
    %v78 = vmul.f32 %v25, %v77
    %v79 = vadd.f32 %v75, %v78
    %s80 = sld [smem:[#allocation2 + $0xb]]
    %v81 = vstv %s80
    %v82 = vmul.f32 %v26, %v81
    %v83 = vadd.f32 %v79, %v82
    %s84 = sld [smem:[#allocation2 + $0xf]]
    %v85 = vstv %s84
    %v86 = vadd.f32 %v83, %v85
    %87 = vst.msk [vmem:[%s2 + $0x3] sm:$0x1] %vm41, %v86
    %s88 = sld [smem:[#allocation2 + $0x10]]
    %v89 = vstv %s88
    %v90 = vmul.f32 %v40, %v89
    %s91 = sld [smem:[#allocation2 + $0x11]]
    %v92 = vstv %s91
    %v93 = vmul.f32 %v56, %v92
    %v94 = vadd.f32 %v90, %v93
    %s95 = sld [smem:[#allocation2 + $0x12]]
    %v96 = vstv %s95
    %v97 = vmul.f32 %v71, %v96
    %v98 = vadd.f32 %v94, %v97
    %s99 = sld [smem:[#allocation2 + $0x13]]
    %v100 = vstv %s99
    %v101 = vmul.f32 %v86, %v100
    %v102 = vadd.f32 %v98, %v101
    %s103 = sld [smem:[#allocation2 + $0x18]]
    %v104 = vstv %s103
    %v105 = vadd.f32 %v102, %v104
    %s106 = scalar_lea.vmem %s2, 4
    %107 = vst.msk [vmem:[%s106] sm:$0x1] %vm41, %v105
    %s108 = sld [smem:[#allocation2 + $0x14]]
    %v109 = vstv %s108
    %v110 = vmul.f32 %v40, %v109
    %s111 = sld [smem:[#allocation2 + $0x15]]
    %v112 = vstv %s111
    %v113 = vmul.f32 %v56, %v112
    %v114 = vadd.f32 %v110, %v113
    %s115 = sld [smem:[#allocation2 + $0x16]]
    %v116 = vstv %s115
    %v117 = vmul.f32 %v71, %v116
    %v118 = vadd.f32 %v114, %v117
    %s119 = sld [smem:[#allocation2 + $0x17]]
    %v120 = vstv %s119
    %v121 = vmul.f32 %v86, %v120
    %v122 = vadd.f32 %v118, %v121
    %s123 = sld [smem:[#allocation2 + $0x19]]
    %v124 = vstv %s123
    %v125 = vadd.f32 %v122, %v124
    %126 = vst.msk [vmem:[%s106 + $0x1] sm:$0x1] %vm41, %v125
    %127 = vst.msk [vmem:[%s106 + $0x2] sm:$0x1] %vm41, 0.0
    %128 = vst.msk [vmem:[%s106 + $0x3] sm:$0x1] %vm41, 0.0
    // Predicated region
    $region14: #{tpu_custom_call.1} parent=1 // pred_check
      _
    $region15: #{tpu_custom_call.1} parent=1 // pred_check_branch
      %130 = sbr.rel (0) target = $region17
    $region16: #{tpu_custom_call.1} parent=1 // pred_region
      _
    $region17: #{tpu_custom_call.1} parent=1 // pred_fallthru
      _
    // Predicated region
    $region18: #{tpu_custom_call.1} parent=1 // pred_check
      _
    $region19: #{tpu_custom_call.1} parent=1 // pred_check_branch
      %132 = sbr.rel (0) target = $region21
    $region20: #{tpu_custom_call.1} parent=1 // pred_region
      _
    $region21: #{tpu_custom_call.1} parent=1 // pred_fallthru
      _
    %133 = vsyncpa [#allocation3], 1

</llo_original>
